<compile_context>
chip_gen: v7x
topology: tpu7x:2x2x1
jax: 0.10.0
libtpu: 0.0.40
codegen_flags: <defaults>
</compile_context>

<pallas_src>
import math
import jax
import jax.numpy as jnp
from jax.experimental import pallas as pl
from jax.experimental.pallas import tpu as pltpu

# ---------------- problem sizes (small, consistent with the module) ----------------
N_NODES = 8            # number of graph nodes
IN_DIM = 32            # inDim  (BatchNorm1d(inDim) => gnn output dim must equal inDim)
OUT_DIM = 16           # outDim per head
HEADS = 2              # TransformerConv(..., heads=2); HEADS * OUT_DIM == IN_DIM
HD = HEADS * OUT_DIM   # 32 = concat output width
PROJ = 4 * HD          # 128 = Q|K|V|skip fused projection width (lane-dense)
EPS = 1e-5
INV_SQRT_D = 1.0 / math.sqrt(OUT_DIM)


def gnn_kernel(x_ref, a_ref, w_ref, aux_ref, out_ref, feat_sc):
    x = x_ref[...]                       # [N, IN_DIM] f32
    A = a_ref[...]                       # [N, N] edge-count matrix (A[i, j] = #edges j -> i)

    # --- one fused, lane-dense projection: [N, 128] = x @ [32, 128] + [1, 128] ---
    proj = (jnp.dot(x, w_ref[...], preferred_element_type=jnp.float32)
            + aux_ref[0:1, :])           # lanes: [0:32)=Q  [32:64)=K  [64:96)=V  [96:128)=skip

    has_edge = A > 0.0
    neg_big = jnp.float32(-1e30)

    # --- per-head attention (HEADS=2, static loop); write agg into VMEM scratch ---
    for h in range(HEADS):
        lo = h * OUT_DIM
        hi = lo + OUT_DIM
        q = proj[:, lo:hi]                               # [N, D]
        k = proj[:, HD + lo:HD + hi]                     # [N, D]
        v = proj[:, 2 * HD + lo:2 * HD + hi]             # [N, D]

        # scores s[i, j] = <q_i, k_j> / sqrt(D)
        s = jnp.dot(q, k.T, preferred_element_type=jnp.float32) * INV_SQRT_D

        # masked, numerically-stable, count-weighted softmax over in-neighbors.
        # exp is taken on the masked scores so isolated rows give exp(0)*0 = 0 (no inf/NaN).
        s_masked = jnp.where(has_edge, s, neg_big)
        m = jnp.max(s_masked, axis=1, keepdims=True)
        p = A * jnp.exp(s_masked - m)
        denom = jnp.sum(p, axis=1, keepdims=True)
        denom = jnp.where(denom > 0.0, denom, 1.0)       # isolated node -> agg = 0
        alpha = p / denom

        feat_sc[:, lo:hi] = jnp.dot(alpha, v, preferred_element_type=jnp.float32)

    # concat(heads) + skip connection
    feat = feat_sc[...] + proj[:, 3 * HD:4 * HD]         # [N, HD]

    # --- BatchNorm1d over node (batch) dim, training-mode batch statistics ---
    gamma = aux_ref[1:2, 0:HD]
    beta = aux_ref[2:3, 0:HD]
    mu = jnp.mean(feat, axis=0, keepdims=True)
    var = jnp.mean((feat - mu) ** 2, axis=0, keepdims=True)   # biased variance
    y = (feat - mu) * jax.lax.rsqrt(var + EPS) * gamma + beta

    # --- Mish: y * tanh(softplus(y)), PyTorch softplus threshold=20 ---
    sp = jnp.where(y > 20.0, y, jnp.log1p(jnp.exp(jnp.minimum(y, 20.0))))
    out_ref[...] = (y * jnp.tanh(sp)).astype(out_ref.dtype)


def _gnn_call(x, A, w_all, aux):
    n = x.shape[0]
    return pl.pallas_call(
        gnn_kernel,
        out_shape=jax.ShapeDtypeStruct((n, HD), jnp.float32),
        # no grid: single invocation, whole (tiny) arrays live in VMEM
        scratch_shapes=[pltpu.VMEM((n, HD), jnp.float32)],
    )(x, A, w_all, aux)


@jax.jit
def gnn_forward(x, edge_index, params):
    """x: [N, IN_DIM] f32; edge_index: [2, E] int32 (row 0 = src, row 1 = dst)."""
    n = x.shape[0]
    # dense count adjacency A[dst, src] += 1 (glue, fused under jit before the kernel)
    # TODO(synk): for large graphs pass neighbor lists via PrefetchScalarGridSpec
    # instead of materializing the dense O(N^2) adjacency.
    A = jnp.zeros((n, n), jnp.float32).at[edge_index[1], edge_index[0]].add(1.0)
    return _gnn_call(x, A, params["w_all"], params["aux"])


def init_params(key):
    ks = jax.random.split(key, 4)
    scale = 1.0 / math.sqrt(IN_DIM)
    # stored as (in, out) so the kernel does x @ W + b
    wq = jax.random.normal(ks[0], (IN_DIM, HD), jnp.float32) * scale
    wk = jax.random.normal(ks[1], (IN_DIM, HD), jnp.float32) * scale
    wv = jax.random.normal(ks[2], (IN_DIM, HD), jnp.float32) * scale
    wskip = jax.random.normal(ks[3], (IN_DIM, HD), jnp.float32) * scale

    bq = jnp.zeros((HD,), jnp.float32)
    bk = jnp.full((HD,), 0.01, jnp.float32)
    bv = jnp.full((HD,), -0.01, jnp.float32)
    bskip = jnp.zeros((HD,), jnp.float32)
    gamma = jnp.ones((HD,), jnp.float32)      # BatchNorm1d weight (default 1)
    beta = jnp.zeros((HD,), jnp.float32)      # BatchNorm1d bias   (default 0)

    # fused lane-dense projection weight [32, 128] and packed aux [3, 128]
    w_all = jnp.concatenate([wq, wk, wv, wskip], axis=1)
    b_all = jnp.concatenate([bq, bk, bv, bskip], axis=0)          # [128]
    pad = jnp.zeros((PROJ - HD,), jnp.float32)                    # [96]
    aux = jnp.stack([b_all,
                     jnp.concatenate([gamma, pad]),
                     jnp.concatenate([beta, pad])], axis=0)       # [3, 128]
    return {"w_all": w_all, "aux": aux}


if __name__ == "__main__":
    key = jax.random.PRNGKey(0)
    k_x, k_p = jax.random.split(key)

    x = jax.random.normal(k_x, (N_NODES, IN_DIM), jnp.float32)

    # deterministic bidirectional ring graph: 2 * N_NODES edges
    src_fwd = jnp.arange(N_NODES, dtype=jnp.int32)
    dst_fwd = (src_fwd + 1) % N_NODES
    edge_index = jnp.stack([
        jnp.concatenate([src_fwd, dst_fwd]),
        jnp.concatenate([dst_fwd, src_fwd]),
    ], axis=0)                                  # [2, 16]

    params = init_params(k_p)

    out = gnn_forward(x, edge_index, params)
    out = jax.block_until_ready(out)

    assert out.shape == (N_NODES, HD)
    assert jnp.all(jnp.isfinite(out))
    print("KERNEL_OK")
</pallas_src>

<mosaic_0001>
module attributes {stable_mosaic.version = 11 : i64} {
  func.func private @main(%arg0: i32) attributes {dimension_semantics = [#tpu.dimension_semantics<core_parallel>], iteration_bounds = array<i64: 2>, tpu.core_type = #tpu.core_type<sc_scalar_subcore>, window_params = []} {
    return
  }
}

module attributes {stable_mosaic.version = 11 : i64} {
  func.func private @main(%arg0: i32) attributes {dimension_semantics = [#tpu.dimension_semantics<core_parallel>], iteration_bounds = array<i64: 2>, tpu.core_type = #tpu.core_type<sc_scalar_subcore>, window_params = []} {
    return
  }
}

module attributes {stable_mosaic.version = 11 : i64} {
  func.func @gnn_kernel(%arg0: memref<8x32xf32, #tpu.memory_space<vmem>>, %arg1: memref<8x8xf32, #tpu.memory_space<vmem>>, %arg2: memref<32x128xf32, #tpu.memory_space<vmem>>, %arg3: memref<3x128xf32, #tpu.memory_space<vmem>>, %arg4: memref<8x32xf32, #tpu.memory_space<vmem>>, %arg5: memref<8x32xf32, #tpu.memory_space<vmem>>) attributes {dimension_semantics = [], scalar_prefetch = 0 : i64, scratch_operands = 1 : i64, tpu.core_type = #tpu.core_type<tc>} {
    %c0 = arith.constant 0 : index
    %c0_0 = arith.constant 0 : index
    %0 = vector.load %arg0[%c0, %c0_0] : memref<8x32xf32, #tpu.memory_space<vmem>>, vector<8x32xf32>
    %c0_1 = arith.constant 0 : index
    %c0_2 = arith.constant 0 : index
    %1 = vector.load %arg1[%c0_1, %c0_2] : memref<8x8xf32, #tpu.memory_space<vmem>>, vector<8x8xf32>
    %c0_3 = arith.constant 0 : index
    %c0_4 = arith.constant 0 : index
    %2 = vector.load %arg2[%c0_3, %c0_4] : memref<32x128xf32, #tpu.memory_space<vmem>>, vector<32x128xf32>
    %cst = arith.constant dense<0.000000e+00> : vector<8x128xf32>
    %3 = tpu.matmul %0, %2, %cst {dimension_numbers = #tpu.dot_dimension_numbers<[1], [0], [0], [1], [0, 0, 1, 1], [], []>} : vector<8x32xf32>, vector<32x128xf32>, vector<8x128xf32> -> vector<8x128xf32>
    %c0_5 = arith.constant 0 : index
    %c0_6 = arith.constant 0 : index
    %4 = vector.load %arg3[%c0_5, %c0_6] : memref<3x128xf32, #tpu.memory_space<vmem>>, vector<1x128xf32>
    %5 = vector.broadcast %4 : vector<1x128xf32> to vector<8x128xf32>
    %6 = arith.addf %3, %5 : vector<8x128xf32>
    %cst_7 = arith.constant 0.000000e+00 : f32
    %7 = vector.broadcast %cst_7 : f32 to vector<8x8xf32>
    %8 = arith.cmpf ogt, %1, %7 : vector<8x8xf32>
    %9 = vector.extract_strided_slice %6 {offsets = [0, 0], sizes = [8, 16], strides = [1, 1]} : vector<8x128xf32> to vector<8x16xf32>
    %10 = vector.extract_strided_slice %6 {offsets = [0, 32], sizes = [8, 16], strides = [1, 1]} : vector<8x128xf32> to vector<8x16xf32>
    %11 = vector.extract_strided_slice %6 {offsets = [0, 64], sizes = [8, 16], strides = [1, 1]} : vector<8x128xf32> to vector<8x16xf32>
    %12 = tpu.transpose %10, [1, 0] : vector<8x16xf32> -> vector<16x8xf32>
    %cst_8 = arith.constant dense<0.000000e+00> : vector<8x8xf32>
    %13 = tpu.matmul %9, %12, %cst_8 {dimension_numbers = #tpu.dot_dimension_numbers<[1], [0], [0], [1], [0, 0, 1, 1], [], []>} : vector<8x16xf32>, vector<16x8xf32>, vector<8x8xf32> -> vector<8x8xf32>
    %cst_9 = arith.constant 2.500000e-01 : f32
    %14 = vector.broadcast %cst_9 : f32 to vector<8x8xf32>
    %15 = arith.mulf %13, %14 : vector<8x8xf32>
    %cst_10 = arith.constant -1.000000e+30 : f32
    %16 = vector.broadcast %cst_10 : f32 to vector<8x8xf32>
    %17 = arith.select %8, %15, %16 : vector<8x8xi1>, vector<8x8xf32>
    %cst_11 = arith.constant dense<0xFF800000> : vector<8xf32>
    %18 = vector.multi_reduction <maximumf>, %17, %cst_11 [1] : vector<8x8xf32> to vector<8xf32>
    %19 = vector.shape_cast %18 : vector<8xf32> to vector<8x1xf32>
    %20 = vector.broadcast %19 : vector<8x1xf32> to vector<8x8xf32>
    %21 = arith.subf %17, %20 : vector<8x8xf32>
    %22 = math.exp %21 : vector<8x8xf32>
    %23 = arith.mulf %1, %22 : vector<8x8xf32>
    %cst_12 = arith.constant dense<0.000000e+00> : vector<8xf32>
    %24 = vector.multi_reduction <add>, %23, %cst_12 [1] : vector<8x8xf32> to vector<8xf32>
    %25 = vector.shape_cast %24 : vector<8xf32> to vector<8x1xf32>
    %cst_13 = arith.constant 0.000000e+00 : f32
    %26 = vector.broadcast %cst_13 : f32 to vector<8x1xf32>
    %27 = arith.cmpf ogt, %25, %26 : vector<8x1xf32>
    %cst_14 = arith.constant 1.000000e+00 : f32
    %28 = vector.broadcast %cst_14 : f32 to vector<8x1xf32>
    %29 = arith.select %27, %25, %28 : vector<8x1xi1>, vector<8x1xf32>
    %30 = vector.broadcast %29 : vector<8x1xf32> to vector<8x8xf32>
    %31 = arith.divf %23, %30 : vector<8x8xf32>
    %cst_15 = arith.constant dense<0.000000e+00> : vector<8x16xf32>
    %32 = tpu.matmul %31, %11, %cst_15 {dimension_numbers = #tpu.dot_dimension_numbers<[1], [0], [0], [1], [0, 0, 1, 1], [], []>} : vector<8x8xf32>, vector<8x16xf32>, vector<8x16xf32> -> vector<8x16xf32>
    %c0_16 = arith.constant 0 : index
    %c0_17 = arith.constant 0 : index
    %33 = vector.load %arg5[%c0_16, %c0_17] : memref<8x32xf32, #tpu.memory_space<vmem>>, vector<8x16xf32>
    tpu.vector_store %arg5[%c0_16, %c0_17], %32 {strides = array<i32>} : memref<8x32xf32, #tpu.memory_space<vmem>>, vector<8x16xf32>,
    %34 = vector.extract_strided_slice %6 {offsets = [0, 16], sizes = [8, 16], strides = [1, 1]} : vector<8x128xf32> to vector<8x16xf32>
    %35 = vector.extract_strided_slice %6 {offsets = [0, 48], sizes = [8, 16], strides = [1, 1]} : vector<8x128xf32> to vector<8x16xf32>
    %36 = vector.extract_strided_slice %6 {offsets = [0, 80], sizes = [8, 16], strides = [1, 1]} : vector<8x128xf32> to vector<8x16xf32>
    %37 = tpu.transpose %35, [1, 0] : vector<8x16xf32> -> vector<16x8xf32>
    %cst_18 = arith.constant dense<0.000000e+00> : vector<8x8xf32>
    %38 = tpu.matmul %34, %37, %cst_18 {dimension_numbers = #tpu.dot_dimension_numbers<[1], [0], [0], [1], [0, 0, 1, 1], [], []>} : vector<8x16xf32>, vector<16x8xf32>, vector<8x8xf32> -> vector<8x8xf32>
    %cst_19 = arith.constant 2.500000e-01 : f32
    %39 = vector.broadcast %cst_19 : f32 to vector<8x8xf32>
    %40 = arith.mulf %38, %39 : vector<8x8xf32>
    %cst_20 = arith.constant -1.000000e+30 : f32
    %41 = vector.broadcast %cst_20 : f32 to vector<8x8xf32>
    %42 = arith.select %8, %40, %41 : vector<8x8xi1>, vector<8x8xf32>
    %cst_21 = arith.constant dense<0xFF800000> : vector<8xf32>
    %43 = vector.multi_reduction <maximumf>, %42, %cst_21 [1] : vector<8x8xf32> to vector<8xf32>
    %44 = vector.shape_cast %43 : vector<8xf32> to vector<8x1xf32>
    %45 = vector.broadcast %44 : vector<8x1xf32> to vector<8x8xf32>
    %46 = arith.subf %42, %45 : vector<8x8xf32>
    %47 = math.exp %46 : vector<8x8xf32>
    %48 = arith.mulf %1, %47 : vector<8x8xf32>
    %cst_22 = arith.constant dense<0.000000e+00> : vector<8xf32>
    %49 = vector.multi_reduction <add>, %48, %cst_22 [1] : vector<8x8xf32> to vector<8xf32>
    %50 = vector.shape_cast %49 : vector<8xf32> to vector<8x1xf32>
    %cst_23 = arith.constant 0.000000e+00 : f32
    %51 = vector.broadcast %cst_23 : f32 to vector<8x1xf32>
    %52 = arith.cmpf ogt, %50, %51 : vector<8x1xf32>
    %cst_24 = arith.constant 1.000000e+00 : f32
    %53 = vector.broadcast %cst_24 : f32 to vector<8x1xf32>
    %54 = arith.select %52, %50, %53 : vector<8x1xi1>, vector<8x1xf32>
    %55 = vector.broadcast %54 : vector<8x1xf32> to vector<8x8xf32>
    %56 = arith.divf %48, %55 : vector<8x8xf32>
    %cst_25 = arith.constant dense<0.000000e+00> : vector<8x16xf32>
    %57 = tpu.matmul %56, %36, %cst_25 {dimension_numbers = #tpu.dot_dimension_numbers<[1], [0], [0], [1], [0, 0, 1, 1], [], []>} : vector<8x8xf32>, vector<8x16xf32>, vector<8x16xf32> -> vector<8x16xf32>
    %c0_26 = arith.constant 0 : index
    %c16 = arith.constant 16 : index
    %58 = vector.load %arg5[%c0_26, %c16] : memref<8x32xf32, #tpu.memory_space<vmem>>, vector<8x16xf32>
    tpu.vector_store %arg5[%c0_26, %c16], %57 {strides = array<i32>} : memref<8x32xf32, #tpu.memory_space<vmem>>, vector<8x16xf32>,
    %c0_27 = arith.constant 0 : index
    %c0_28 = arith.constant 0 : index
    %59 = vector.load %arg5[%c0_27, %c0_28] : memref<8x32xf32, #tpu.memory_space<vmem>>, vector<8x32xf32>
    %60 = vector.extract_strided_slice %6 {offsets = [0, 96], sizes = [8, 32], strides = [1, 1]} : vector<8x128xf32> to vector<8x32xf32>
    %61 = arith.addf %59, %60 : vector<8x32xf32>
    %c1 = arith.constant 1 : index
    %c0_29 = arith.constant 0 : index
    %62 = vector.load %arg3[%c1, %c0_29] : memref<3x128xf32, #tpu.memory_space<vmem>>, vector<1x32xf32>
    %c2 = arith.constant 2 : index
    %c0_30 = arith.constant 0 : index
    %63 = vector.load %arg3[%c2, %c0_30] : memref<3x128xf32, #tpu.memory_space<vmem>>, vector<1x32xf32>
    %cst_31 = arith.constant dense<0.000000e+00> : vector<32xf32>
    %64 = vector.multi_reduction <add>, %61, %cst_31 [0] : vector<8x32xf32> to vector<32xf32>
    %65 = vector.shape_cast %64 : vector<32xf32> to vector<1x32xf32>
    %cst_32 = arith.constant 8.000000e+00 : f32
    %66 = vector.broadcast %cst_32 : f32 to vector<1x32xf32>
    %67 = arith.divf %65, %66 : vector<1x32xf32>
    %68 = vector.broadcast %67 : vector<1x32xf32> to vector<8x32xf32>
    %69 = arith.subf %61, %68 : vector<8x32xf32>
    %70 = arith.mulf %69, %69 : vector<8x32xf32>
    %cst_33 = arith.constant dense<0.000000e+00> : vector<32xf32>
    %71 = vector.multi_reduction <add>, %70, %cst_33 [0] : vector<8x32xf32> to vector<32xf32>
    %72 = vector.shape_cast %71 : vector<32xf32> to vector<1x32xf32>
    %cst_34 = arith.constant 8.000000e+00 : f32
    %73 = vector.broadcast %cst_34 : f32 to vector<1x32xf32>
    %74 = arith.divf %72, %73 : vector<1x32xf32>
    %75 = vector.broadcast %67 : vector<1x32xf32> to vector<8x32xf32>
    %76 = arith.subf %61, %75 : vector<8x32xf32>
    %cst_35 = arith.constant 9.99999974E-6 : f32
    %77 = vector.broadcast %cst_35 : f32 to vector<1x32xf32>
    %78 = arith.addf %74, %77 : vector<1x32xf32>
    %79 = math.rsqrt %78 : vector<1x32xf32>
    %80 = vector.broadcast %79 : vector<1x32xf32> to vector<8x32xf32>
    %81 = arith.mulf %76, %80 : vector<8x32xf32>
    %82 = vector.broadcast %62 : vector<1x32xf32> to vector<8x32xf32>
    %83 = arith.mulf %81, %82 : vector<8x32xf32>
    %84 = vector.broadcast %63 : vector<1x32xf32> to vector<8x32xf32>
    %85 = arith.addf %83, %84 : vector<8x32xf32>
    %cst_36 = arith.constant 2.000000e+01 : f32
    %86 = vector.broadcast %cst_36 : f32 to vector<8x32xf32>
    %87 = arith.cmpf ogt, %85, %86 : vector<8x32xf32>
    %cst_37 = arith.constant 2.000000e+01 : f32
    %88 = vector.broadcast %cst_37 : f32 to vector<8x32xf32>
    %89 = arith.minimumf %85, %88 : vector<8x32xf32>
    %90 = math.exp %89 : vector<8x32xf32>
    %91 = math.log1p %90 : vector<8x32xf32>
    %92 = arith.select %87, %85, %91 : vector<8x32xi1>, vector<8x32xf32>
    %93 = math.tanh %92 : vector<8x32xf32>
    %94 = arith.mulf %85, %93 : vector<8x32xf32>
    %c0_38 = arith.constant 0 : index
    %c0_39 = arith.constant 0 : index
    %95 = vector.load %arg4[%c0_38, %c0_39] : memref<8x32xf32, #tpu.memory_space<vmem>>, vector<8x32xf32>
    tpu.vector_store %arg4[%c0_38, %c0_39], %94 {strides = array<i32>} : memref<8x32xf32, #tpu.memory_space<vmem>>, vector<8x32xf32>,
    return
  }
}

</mosaic_0001>

<llo_original>
// kernel: gnn_forward.1
$region0: #{gnn_forward.1}
  #allocation0 [shape = 'u32[]', space=smem, size = 0x4, offset = 0x4, fixed_abs, tag = 'smem constant byte address 0x4 - core index']
  #allocation1 [shape = 'u32[144,128]{1,0:T(1,128)}', space=vmem, size = 0x12000, scoped, tag = 'internal scratch']
  #allocation2 [shape = 'f32[8,32]{1,0:T(8,128)}', space=vmem, size = 0x1000, scoped, tag = 'scratch operand']
  %s0 = inlined_call_operand.vmem [shape: f32[8,32], index: 0, kind: input, shape index: {}]
  %s1 = inlined_call_operand.hbm [shape: f32[8,8], index: 1, kind: input, shape index: {}]
  %s2 = inlined_call_operand.vmem [shape: f32[32,128], index: 2, kind: input, shape index: {}]
  %s3 = inlined_call_operand.vmem [shape: f32[3,128], index: 3, kind: input, shape index: {}]
  %s4 = inlined_call_operand.hbm [shape: f32[8,32], index: 4, kind: output, shape index: {}]
  %s5 = sld [smem:[#allocation0]]
  $region30: #{gnn_forward.1} parent=0
    _
  %s7 = ssub.s32 1, %s5
  %s8 = scalar_select 0, %s7, %s5
  $region1: #{gnn_forward.1} parent=0
    #allocation3 [shape = 'u8[4096]{0}', space=vmem, size = 0x1000, scoped, tag = 'input window, operand 1, single buffered']
    #allocation4 [shape = 's32[1]{0}', space=sflag, size = 0x4, scoped, tag = 'scoped memory for gnn_forward.1']
    #allocation5 [shape = 's32[1]{0}', space=sflag, size = 0x4, scoped, tag = 'scoped memory for gnn_forward.1']
    #allocation6 [shape = 'u8[4096]{0}', space=vmem, size = 0x1000, scoped, tag = 'output window, operand 0, single buffered']
    %9 = vsyncpa [#allocation4], 0
    %10 = vsyncpa [#allocation5], 0
    // Predicated region
    $region2: #{gnn_forward.1} parent=1 // pred_check
      _
    $region3: #{gnn_forward.1} parent=1 // pred_check_branch
      %12 = sbr.rel (0) target = $region5
    $region4: #{gnn_forward.1} parent=1 // pred_region
      _
    $region5: #{gnn_forward.1} parent=1 // pred_fallthru
      _
    // Predicated region
    $region6: #{gnn_forward.1} parent=1 // pred_check
      _
    $region7: #{gnn_forward.1} parent=1 // pred_check_branch
      %14 = sbr.rel (0) target = $region9
    $region8: #{gnn_forward.1} parent=1 // pred_region
      %s16 = ssub.s32 128, 128
      %17 = vsyncadd [#allocation4], %s16
      %s19 = sshll.u32 [#allocation3], 4
      %s20 = int_to_ptr.vmem [resolvable:$true] %s19
      %22 = dma.hbm_to_vmem [thread:$0]  %s1, 128, %s20, [#allocation4]
    $region9: #{gnn_forward.1} parent=1 // pred_fallthru
      _
    // Predicated region
    $region10: #{gnn_forward.1} parent=1 // pred_check
      _
    $region11: #{gnn_forward.1} parent=1 // pred_check_branch
      %24 = sbr.rel (0) target = $region13
    $region12: #{gnn_forward.1} parent=1 // pred_region
      _
    $region13: #{gnn_forward.1} parent=1 // pred_fallthru
      _
    // Predicated region
    $region14: #{gnn_forward.1} parent=1 // pred_check
      _
    $region15: #{gnn_forward.1} parent=1 // pred_check_branch
      %26 = sbr.rel (0) target = $region17
    $region16: #{gnn_forward.1} parent=1 // pred_region
      _
    $region17: #{gnn_forward.1} parent=1 // pred_fallthru
      _
    // Predicated region
    $region18: #{gnn_forward.1} parent=1 // pred_check
      _
    $region19: #{gnn_forward.1} parent=1 // pred_check_branch
      %28 = sbr.rel (0) target = $region21
    $region20: #{gnn_forward.1} parent=1 // pred_region
      %29 = dma.done [#allocation4], 128
    $region21: #{gnn_forward.1} parent=1 // pred_fallthru
      _
    %v30 = vld [vmem:[%s0] sm:$0xff]
    %v31 = vld [vmem:[#allocation3] sm:$0xff]
    %v32 = vld [vmem:[%s2] sm:$0xff]
    %v33 = vld [vmem:[%s2 + $0x8] sm:$0xff]
    %v34 = vld [vmem:[%s2 + $0x10] sm:$0xff]
    %v35 = vld [vmem:[%s2 + $0x18] sm:$0xff]
    %v36 = vld [vmem:[%s3] sm:$0x1]
    %v37 = vlaneseq
    %v38 = vshrl.u32 %v37, 7
    %v39 = vsub.s32 0, %v38
    %v40 = vrot.slane %v36, %v39
    %vm41 = vcmask 261120
    %v43 = vsel %vm41, %v30, 0
    %45 = vmatprep.subr.mxu0 0.0
    %46 = vmatpush1.msra.mxu0 %v32
    %47 = vmatprep.subr.mxu0 0.0
    %48 = vmatpush1.msra.mxu0 %v33
    %49 = vmatprep.subr.mxu0 0.0
    %50 = vmatpush1.msra.mxu0 %v34
    %51 = vmatprep.subr.mxu0 0.0
    %52 = vmatpush1.msra.mxu0 %v35
    %53 = vmatprep.subr.mxu0 0.0
    %54 = vmatpush1.msra.mxu0 0.0
    %55 = vmatprep.subr.mxu0 0.0
    %56 = vmatpush1.msra.mxu0 0.0
    %57 = vmatprep.subr.mxu0 0.0
    %58 = vmatpush1.msra.mxu0 0.0
    %59 = vmatprep.subr.mxu0 0.0
    %60 = vmatpush1.msra.mxu0 0.0
    %61 = vmatprep.subr.mxu0 0.0
    %62 = vmatpush1.msra.mxu0 0.0
    %63 = vmatprep.subr.mxu0 0.0
    %64 = vmatpush1.msra.mxu0 0.0
    %65 = vmatprep.subr.mxu0 0.0
    %66 = vmatpush1.msra.mxu0 0.0
    %67 = vmatprep.subr.mxu0 0.0
    %68 = vmatpush1.msra.mxu0 0.0
    %69 = vmatprep.subr.mxu0 0.0
    %70 = vmatpush1.msra.mxu0 0.0
    %71 = vmatprep.subr.mxu0 0.0
    %72 = vmatpush1.msra.mxu0 0.0
    %73 = vmatprep.subr.mxu0 0.0
    %74 = vmatpush1.msra.mxu0 0.0
    %75 = vmatprep.subr.mxu0 0.0
    %76 = vmatpush1.msra.mxu0 0.0
    %77 = vmatprep.subr.mxu0 0.0
    %78 = vmatpush1.msra.mxu0 0.0
    %79 = vmatprep.subr.mxu0 0.0
    %80 = vmatpush1.msra.mxu0 0.0
    %81 = vmatprep.subr.mxu0 0.0
    %82 = vmatpush1.msra.mxu0 0.0
    %83 = vmatprep.subr.mxu0 0.0
    %84 = vmatpush1.msra.mxu0 0.0
    %85 = vmatprep.subr.mxu0 0.0
    %86 = vmatpush1.msra.mxu0 0.0
    %87 = vmatprep.subr.mxu0 0.0
    %88 = vmatpush1.msra.mxu0 0.0
    %89 = vmatprep.subr.mxu0 0.0
    %90 = vmatpush1.msra.mxu0 0.0
    %91 = vmatprep.subr.mxu0 0.0
    %92 = vmatpush1.msra.mxu0 0.0
    %93 = vmatprep.subr.mxu0 0.0
    %94 = vmatpush1.msra.mxu0 0.0
    %95 = vmatprep.subr.mxu0 0.0
    %96 = vmatpush1.msra.mxu0 0.0
    %97 = vmatprep.subr.mxu0 0.0
    %98 = vmatpush1.msra.mxu0 0.0
    %99 = vmatprep.subr.mxu0 0.0
    %100 = vmatpush1.msra.mxu0 0.0
    %101 = vmatprep.subr.mxu0 0.0
    %102 = vmatpush1.msra.mxu0 0.0
    %103 = vmatprep.subr.mxu0 0.0
    %104 = vmatpush1.msra.mxu0 0.0
    %105 = vmatprep.subr.mxu0 0.0
    %106 = vmatpush1.msra.mxu0 0.0
    %107 = vmatprep.subr.mxu0 0.0
    %108 = vmatpush1.msra.mxu0 0.0
    %109 = vmatprep.mubr.f32.mxu0 0.0
    %110 = vmatmul.mubr.f32.gmra.mrb[0].mxu0 %v43
    %v111 = vpop.f32.mrb[0].mxu0
    %v112 = vadd.f32 %v40, %v111
    %v113 = vpop.f32.mrb[0].mxu0
    %114 = vdwg.mxu0
    %vm115 = vcmp.gt.f32.partialorder %v31, 0.0
    %117 = vrot.lane.b32.xlu0 %v112, 96
    %v118 = vpop.permute.xlu0 %117
    %vm119 = vcmask 130048
    %v120 = vsel %vm119, %v112, 0
    %v122 = vsel %vm119, %v118, 0
    %124 = vmatprep.subr.mxu0 0.0
    %125 = vmatpush1.xpose.msra.mxu0 %v122
    %126 = vmatprep.subr.mxu0 0.0
    %127 = vmatpush1.xpose.msra.mxu0 0.0
    %128 = vmatprep.subr.mxu0 0.0
    %129 = vmatpush1.xpose.msra.mxu0 0.0
    %130 = vmatprep.subr.mxu0 0.0
    %131 = vmatpush1.xpose.msra.mxu0 0.0
    %132 = vmatprep.subr.mxu0 0.0
    %133 = vmatpush1.xpose.msra.mxu0 0.0
    %134 = vmatprep.subr.mxu0 0.0
    %135 = vmatpush1.xpose.msra.mxu0 0.0
    %136 = vmatprep.subr.mxu0 0.0
    %137 = vmatpush1.xpose.msra.mxu0 0.0
    %138 = vmatprep.subr.mxu0 0.0
    %139 = vmatpush1.xpose.msra.mxu0 0.0
    %140 = vmatprep.subr.mxu0 0.0
    %141 = vmatpush1.xpose.msra.mxu0 0.0
    %142 = vmatprep.subr.mxu0 0.0
    %143 = vmatpush1.xpose.msra.mxu0 0.0
    %144 = vmatprep.subr.mxu0 0.0
    %145 = vmatpush1.xpose.msra.mxu0 0.0
    %146 = vmatprep.subr.mxu0 0.0
    %147 = vmatpush1.xpose.msra.mxu0 0.0
    %148 = vmatprep.subr.mxu0 0.0
    %149 = vmatpush1.xpose.msra.mxu0 0.0
    %150 = vmatprep.subr.mxu0 0.0
    %151 = vmatpush1.xpose.msra.mxu0 0.0
    %152 = vmatprep.subr.mxu0 0.0
    %153 = vmatpush1.xpose.msra.mxu0 0.0
    %154 = vmatprep.subr.mxu0 0.0
    %155 = vmatpush1.xpose.msra.mxu0 0.0
    %156 = vmatprep.subr.mxu0 0.0
    %157 = vmatpush1.xpose.msra.mxu0 0.0
    %158 = vmatprep.subr.mxu0 0.0
    %159 = vmatpush1.xpose.msra.mxu0 0.0
    %160 = vmatprep.subr.mxu0 0.0
    %161 = vmatpush1.xpose.msra.mxu0 0.0
    %162 = vmatprep.subr.mxu0 0.0
    %163 = vmatpush1.xpose.msra.mxu0 0.0
    %164 = vmatprep.subr.mxu0 0.0
    %165 = vmatpush1.xpose.msra.mxu0 0.0
    %166 = vmatprep.subr.mxu0 0.0
    %167 = vmatpush1.xpose.msra.mxu0 0.0
    %168 = vmatprep.subr.mxu0 0.0
    %169 = vmatpush1.xpose.msra.mxu0 0.0
    %170 = vmatprep.subr.mxu0 0.0
    %171 = vmatpush1.xpose.msra.mxu0 0.0
    %172 = vmatprep.subr.mxu0 0.0
    %173 = vmatpush1.xpose.msra.mxu0 0.0
    %174 = vmatprep.subr.mxu0 0.0
    %175 = vmatpush1.xpose.msra.mxu0 0.0
    %176 = vmatprep.subr.mxu0 0.0
    %177 = vmatpush1.xpose.msra.mxu0 0.0
    %178 = vmatprep.subr.mxu0 0.0
    %179 = vmatpush1.xpose.msra.mxu0 0.0
    %180 = vmatprep.subr.mxu0 0.0
    %181 = vmatpush1.xpose.msra.mxu0 0.0
    %182 = vmatprep.subr.mxu0 0.0
    %183 = vmatpush1.xpose.msra.mxu0 0.0
    %184 = vmatprep.subr.mxu0 0.0
    %185 = vmatpush1.xpose.msra.mxu0 0.0
    %186 = vmatprep.subr.mxu0 0.0
    %187 = vmatpush1.xpose.msra.mxu0 0.0
    %188 = vmatprep.mubr.f32.mxu0 0.0
    %189 = vmatmul.mubr.f32.gmra.mrb[0].mxu0 %v120
    %v190 = vpop.f32.mrb[0].mxu0
    %v191 = vadd.f32 0.0, %v190
    %v192 = vpop.f32.mrb[0].mxu0
    %193 = vdwg.mxu0
    %v194 = vmul.f32 %v191, 0.25
    %v195 = vsel %vm115, %v194, -1e+30
    %vm196 = vcmask 64512
    %v197 = vsel %vm196, %v195, -inf
    %198 = vmax.xlane.f32.xlu0 %v197
    %v199 = vpop.xlane.xlu0 %198
    %v200 = vsub.f32 %v195, %v199
    %v201 = vmul.f32 %v200, 1.442695
    %v202 = vpow.pop %v201
    %v203 = vmul.f32 %v31, %v202
    %v204 = vsel %vm196, %v203, 0.0
    %205 = vadd.xlane.f32.xlu0 %v204
    %v206 = vpop.xlane.xlu0 %205
    %vm207 = vcmp.gt.f32.partialorder %v206, 0.0
    %v208 = vsel %vm207, %v206, 1.0
    %v209 = vrcp.pop %v208
    %v210 = vmul.f32 %v203, %v209
    %211 = vrot.lane.b32.xlu0 %v112, 64
    %v212 = vpop.permute.xlu0 %211
    %v215 = vsel %vm196, %v210, 0
    %217 = vmatprep.subr.mxu0 0.0
    %218 = vmatpush1.msra.mxu0 %v212
    %219 = vmatprep.subr.mxu0 0.0
    %220 = vmatpush1.msra.mxu0 0.0
    %221 = vmatprep.subr.mxu0 0.0
    %222 = vmatpush1.msra.mxu0 0.0
    %223 = vmatprep.subr.mxu0 0.0
    %224 = vmatpush1.msra.mxu0 0.0
    %225 = vmatprep.subr.mxu0 0.0
    %226 = vmatpush1.msra.mxu0 0.0
    %227 = vmatprep.subr.mxu0 0.0
    %228 = vmatpush1.msra.mxu0 0.0
    %229 = vmatprep.subr.mxu0 0.0
    %230 = vmatpush1.msra.mxu0 0.0
    %231 = vmatprep.subr.mxu0 0.0
    %232 = vmatpush1.msra.mxu0 0.0
    %233 = vmatprep.subr.mxu0 0.0
    %234 = vmatpush1.msra.mxu0 0.0
    %235 = vmatprep.subr.mxu0 0.0
    %236 = vmatpush1.msra.mxu0 0.0
    %237 = vmatprep.subr.mxu0 0.0
    %238 = vmatpush1.msra.mxu0 0.0
    %239 = vmatprep.subr.mxu0 0.0
    %240 = vmatpush1.msra.mxu0 0.0
    %241 = vmatprep.subr.mxu0 0.0
    %242 = vmatpush1.msra.mxu0 0.0
    %243 = vmatprep.subr.mxu0 0.0
    %244 = vmatpush1.msra.mxu0 0.0
    %245 = vmatprep.subr.mxu0 0.0
    %246 = vmatpush1.msra.mxu0 0.0
    %247 = vmatprep.subr.mxu0 0.0
    %248 = vmatpush1.msra.mxu0 0.0
    %249 = vmatprep.subr.mxu0 0.0
    %250 = vmatpush1.msra.mxu0 0.0
    %251 = vmatprep.subr.mxu0 0.0
    %252 = vmatpush1.msra.mxu0 0.0
    %253 = vmatprep.subr.mxu0 0.0
    %254 = vmatpush1.msra.mxu0 0.0
    %255 = vmatprep.subr.mxu0 0.0
    %256 = vmatpush1.msra.mxu0 0.0
    %257 = vmatprep.subr.mxu0 0.0
    %258 = vmatpush1.msra.mxu0 0.0
    %259 = vmatprep.subr.mxu0 0.0
    %260 = vmatpush1.msra.mxu0 0.0
    %261 = vmatprep.subr.mxu0 0.0
    %262 = vmatpush1.msra.mxu0 0.0
    %263 = vmatprep.subr.mxu0 0.0
    %264 = vmatpush1.msra.mxu0 0.0
    %265 = vmatprep.subr.mxu0 0.0
    %266 = vmatpush1.msra.mxu0 0.0
    %267 = vmatprep.subr.mxu0 0.0
    %268 = vmatpush1.msra.mxu0 0.0
    %269 = vmatprep.subr.mxu0 0.0
    %270 = vmatpush1.msra.mxu0 0.0
    %271 = vmatprep.subr.mxu0 0.0
    %272 = vmatpush1.msra.mxu0 0.0
    %273 = vmatprep.subr.mxu0 0.0
    %274 = vmatpush1.msra.mxu0 0.0
    %275 = vmatprep.subr.mxu0 0.0
    %276 = vmatpush1.msra.mxu0 0.0
    %277 = vmatprep.subr.mxu0 0.0
    %278 = vmatpush1.msra.mxu0 0.0
    %279 = vmatprep.subr.mxu0 0.0
    %280 = vmatpush1.msra.mxu0 0.0
    %281 = vmatprep.mubr.f32.mxu0 0.0
    %282 = vmatmul.mubr.f32.gmra.mrb[0].mxu0 %v215
    %v283 = vpop.f32.mrb[0].mxu0
    %v284 = vadd.f32 0.0, %v283
    %v285 = vpop.f32.mrb[0].mxu0
    %286 = vdwg.mxu0
    %287 = vst.msk [vmem:[#allocation2] sm:$0xff] %vm119, %v284
    %288 = vrot.lane.b32.xlu0 %v112, 112
    %v289 = vpop.permute.xlu0 %288
    %290 = vrot.lane.b32.xlu0 %v112, 80
    %v291 = vpop.permute.xlu0 %290
    %v292 = vsel %vm119, %v289, 0
    %v294 = vsel %vm119, %v291, 0
    %296 = vmatprep.subr.mxu0 0.0
    %297 = vmatpush1.xpose.msra.mxu0 %v294
    %298 = vmatprep.subr.mxu0 0.0
    %299 = vmatpush1.xpose.msra.mxu0 0.0
    %300 = vmatprep.subr.mxu0 0.0
    %301 = vmatpush1.xpose.msra.mxu0 0.0
    %302 = vmatprep.subr.mxu0 0.0
    %303 = vmatpush1.xpose.msra.mxu0 0.0
    %304 = vmatprep.subr.mxu0 0.0
    %305 = vmatpush1.xpose.msra.mxu0 0.0
    %306 = vmatprep.subr.mxu0 0.0
    %307 = vmatpush1.xpose.msra.mxu0 0.0
    %308 = vmatprep.subr.mxu0 0.0
    %309 = vmatpush1.xpose.msra.mxu0 0.0
    %310 = vmatprep.subr.mxu0 0.0
    %311 = vmatpush1.xpose.msra.mxu0 0.0
    %312 = vmatprep.subr.mxu0 0.0
    %313 = vmatpush1.xpose.msra.mxu0 0.0
    %314 = vmatprep.subr.mxu0 0.0
    %315 = vmatpush1.xpose.msra.mxu0 0.0
    %316 = vmatprep.subr.mxu0 0.0
    %317 = vmatpush1.xpose.msra.mxu0 0.0
    %318 = vmatprep.subr.mxu0 0.0
    %319 = vmatpush1.xpose.msra.mxu0 0.0
    %320 = vmatprep.subr.mxu0 0.0
    %321 = vmatpush1.xpose.msra.mxu0 0.0
    %322 = vmatprep.subr.mxu0 0.0
    %323 = vmatpush1.xpose.msra.mxu0 0.0
    %324 = vmatprep.subr.mxu0 0.0
    %325 = vmatpush1.xpose.msra.mxu0 0.0
    %326 = vmatprep.subr.mxu0 0.0
    %327 = vmatpush1.xpose.msra.mxu0 0.0
    %328 = vmatprep.subr.mxu0 0.0
    %329 = vmatpush1.xpose.msra.mxu0 0.0
    %330 = vmatprep.subr.mxu0 0.0
    %331 = vmatpush1.xpose.msra.mxu0 0.0
    %332 = vmatprep.subr.mxu0 0.0
    %333 = vmatpush1.xpose.msra.mxu0 0.0
    %334 = vmatprep.subr.mxu0 0.0
    %335 = vmatpush1.xpose.msra.mxu0 0.0
    %336 = vmatprep.subr.mxu0 0.0
    %337 = vmatpush1.xpose.msra.mxu0 0.0
    %338 = vmatprep.subr.mxu0 0.0
    %339 = vmatpush1.xpose.msra.mxu0 0.0
    %340 = vmatprep.subr.mxu0 0.0
    %341 = vmatpush1.xpose.msra.mxu0 0.0
    %342 = vmatprep.subr.mxu0 0.0
    %343 = vmatpush1.xpose.msra.mxu0 0.0
    %344 = vmatprep.subr.mxu0 0.0
    %345 = vmatpush1.xpose.msra.mxu0 0.0
    %346 = vmatprep.subr.mxu0 0.0
    %347 = vmatpush1.xpose.msra.mxu0 0.0
    %348 = vmatprep.subr.mxu0 0.0
    %349 = vmatpush1.xpose.msra.mxu0 0.0
    %350 = vmatprep.subr.mxu0 0.0
    %351 = vmatpush1.xpose.msra.mxu0 0.0
    %352 = vmatprep.subr.mxu0 0.0
    %353 = vmatpush1.xpose.msra.mxu0 0.0
    %354 = vmatprep.subr.mxu0 0.0
    %355 = vmatpush1.xpose.msra.mxu0 0.0
    %356 = vmatprep.subr.mxu0 0.0
    %357 = vmatpush1.xpose.msra.mxu0 0.0
    %358 = vmatprep.subr.mxu0 0.0
    %359 = vmatpush1.xpose.msra.mxu0 0.0
    %360 = vmatprep.mubr.f32.mxu0 0.0
    %361 = vmatmul.mubr.f32.gmra.mrb[0].mxu0 %v292
    %v362 = vpop.f32.mrb[0].mxu0
    %v363 = vadd.f32 0.0, %v362
    %v364 = vpop.f32.mrb[0].mxu0
    %365 = vdwg.mxu0
    %v366 = vmul.f32 %v363, 0.25
    %v367 = vsel %vm115, %v366, -1e+30
    %v368 = vsel %vm196, %v367, -inf
    %369 = vmax.xlane.f32.xlu0 %v368
    %v370 = vpop.xlane.xlu0 %369
    %v371 = vsub.f32 %v367, %v370
    %v372 = vmul.f32 %v371, 1.442695
    %v373 = vpow.pop %v372
    %v374 = vmul.f32 %v31, %v373
    %v375 = vsel %vm196, %v374, 0.0
    %376 = vadd.xlane.f32.xlu0 %v375
    %v377 = vpop.xlane.xlu0 %376
    %vm378 = vcmp.gt.f32.partialorder %v377, 0.0
    %v379 = vsel %vm378, %v377, 1.0
    %v380 = vrcp.pop %v379
    %v381 = vmul.f32 %v374, %v380
    %382 = vrot.lane.b32.xlu0 %v112, 48
    %v383 = vpop.permute.xlu0 %382
    %v386 = vsel %vm196, %v381, 0
    %388 = vmatprep.subr.mxu0 0.0
    %389 = vmatpush1.msra.mxu0 %v383
    %390 = vmatprep.subr.mxu0 0.0
    %391 = vmatpush1.msra.mxu0 0.0
    %392 = vmatprep.subr.mxu0 0.0
    %393 = vmatpush1.msra.mxu0 0.0
    %394 = vmatprep.subr.mxu0 0.0
    %395 = vmatpush1.msra.mxu0 0.0
    %396 = vmatprep.subr.mxu0 0.0
    %397 = vmatpush1.msra.mxu0 0.0
    %398 = vmatprep.subr.mxu0 0.0
    %399 = vmatpush1.msra.mxu0 0.0
    %400 = vmatprep.subr.mxu0 0.0
    %401 = vmatpush1.msra.mxu0 0.0
    %402 = vmatprep.subr.mxu0 0.0
    %403 = vmatpush1.msra.mxu0 0.0
    %404 = vmatprep.subr.mxu0 0.0
    %405 = vmatpush1.msra.mxu0 0.0
    %406 = vmatprep.subr.mxu0 0.0
    %407 = vmatpush1.msra.mxu0 0.0
    %408 = vmatprep.subr.mxu0 0.0
    %409 = vmatpush1.msra.mxu0 0.0
    %410 = vmatprep.subr.mxu0 0.0
    %411 = vmatpush1.msra.mxu0 0.0
    %412 = vmatprep.subr.mxu0 0.0
    %413 = vmatpush1.msra.mxu0 0.0
    %414 = vmatprep.subr.mxu0 0.0
    %415 = vmatpush1.msra.mxu0 0.0
    %416 = vmatprep.subr.mxu0 0.0
    %417 = vmatpush1.msra.mxu0 0.0
    %418 = vmatprep.subr.mxu0 0.0
    %419 = vmatpush1.msra.mxu0 0.0
    %420 = vmatprep.subr.mxu0 0.0
    %421 = vmatpush1.msra.mxu0 0.0
    %422 = vmatprep.subr.mxu0 0.0
    %423 = vmatpush1.msra.mxu0 0.0
    %424 = vmatprep.subr.mxu0 0.0
    %425 = vmatpush1.msra.mxu0 0.0
    %426 = vmatprep.subr.mxu0 0.0
    %427 = vmatpush1.msra.mxu0 0.0
    %428 = vmatprep.subr.mxu0 0.0
    %429 = vmatpush1.msra.mxu0 0.0
    %430 = vmatprep.subr.mxu0 0.0
    %431 = vmatpush1.msra.mxu0 0.0
    %432 = vmatprep.subr.mxu0 0.0
    %433 = vmatpush1.msra.mxu0 0.0
    %434 = vmatprep.subr.mxu0 0.0
    %435 = vmatpush1.msra.mxu0 0.0
    %436 = vmatprep.subr.mxu0 0.0
    %437 = vmatpush1.msra.mxu0 0.0
    %438 = vmatprep.subr.mxu0 0.0
    %439 = vmatpush1.msra.mxu0 0.0
    %440 = vmatprep.subr.mxu0 0.0
    %441 = vmatpush1.msra.mxu0 0.0
    %442 = vmatprep.subr.mxu0 0.0
    %443 = vmatpush1.msra.mxu0 0.0
    %444 = vmatprep.subr.mxu0 0.0
    %445 = vmatpush1.msra.mxu0 0.0
    %446 = vmatprep.subr.mxu0 0.0
    %447 = vmatpush1.msra.mxu0 0.0
    %448 = vmatprep.subr.mxu0 0.0
    %449 = vmatpush1.msra.mxu0 0.0
    %450 = vmatprep.subr.mxu0 0.0
    %451 = vmatpush1.msra.mxu0 0.0
    %452 = vmatprep.mubr.f32.mxu0 0.0
    %453 = vmatmul.mubr.f32.gmra.mrb[0].mxu0 %v386
    %v454 = vpop.f32.mrb[0].mxu0
    %v455 = vadd.f32 0.0, %v454
    %v456 = vpop.f32.mrb[0].mxu0
    %457 = vdwg.mxu0
    %459 = vrot.lane.b32.xlu0 %v455, 16
    %v460 = vpop.permute.xlu0 %459
    %vm462 = vcmask 261248
    %463 = vst.msk [vmem:[#allocation2] sm:$0xff] %vm462, %v460
    %v464 = vld [vmem:[#allocation2] sm:$0xff]
    %465 = vrot.lane.b32.xlu0 %v112, 32
    %v466 = vpop.permute.xlu0 %465
    %v468 = vadd.f32 %v464, %v466
    %v469 = vld [vmem:[%s3 + $0x1] sm:$0x1]
    %v470 = vld [vmem:[%s3 + $0x2] sm:$0x1]
    %v471 = vsel %vm41, %v468, 0.0
    %v472 = vrot.slane %v471, 4
    %v473 = vadd.f32 %v471, %v472
    %v474 = vrot.slane %v473, 2
    %v475 = vadd.f32 %v473, %v474
    %v476 = vrot.slane %v475, 1
    %v477 = vadd.f32 %v475, %v476
    %v478 = vrcp.pop 8.0
    %v479 = vmul.f32 %v477, %v478
    %v480 = vsub.f32 %v468, %v479
    %v481 = vmul.f32 %v480, %v480
    %v482 = vsel %vm41, %v481, 0.0
    %v483 = vrot.slane %v482, 4
    %v484 = vadd.f32 %v482, %v483
    %v485 = vrot.slane %v484, 2
    %v486 = vadd.f32 %v484, %v485
    %v487 = vrot.slane %v486, 1
    %v488 = vadd.f32 %v486, %v487
    %v489 = vmul.f32 %v488, %v478
    %v490 = vadd.f32 %v489, 1e-05
    %v491 = vrsqrt.pop %v490
    %v492 = vmul.f32 %v480, %v491
    %v493 = vlaneseq
    %v494 = vshrl.u32 %v493, 7
    %v495 = vsub.s32 0, %v494
    %v496 = vrot.slane %v469, %v495
    %v497 = vmul.f32 %v492, %v496
    %v498 = vlaneseq
    %v499 = vshrl.u32 %v498, 7
    %v500 = vsub.s32 0, %v499
    %v501 = vrot.slane %v470, %v500
    %v502 = vadd.f32 %v497, %v501
    %vm503 = vcmp.gt.f32.partialorder %v502, 20.0
    %v504 = vmin.f32 %v502, 20.0
    %v505 = vmul.f32 %v504, 1.442695
    %v506 = vpow.pop %v505
    %v507 = vadd.f32 %v506, 1.0
    %v508 = vlog2.pop %v507
    %v509 = vmul.f32 %v508, 0.6931472
    %v510 = vmul.f32 -0.5, %v506
    %v511 = vadd.f32 %v510, 1.0
    %v512 = vmul.f32 %v511, %v506
    %v513 = vand.u32 2147483647, %v506
    %vm514 = vcmp.lt.f32.partialorder %v513, 0.0004427343
    %v515 = vsel %vm514, %v512, %v509
    %v516 = vsel %vm503, %v502, %v515
    %v517 = vtanh.pop %v516
    %v518 = vmul.f32 %v502, %v517
    %519 = vst.msk [vmem:[#allocation6] sm:$0xff] %vm41, %v518
    // Predicated region
    $region22: #{gnn_forward.1} parent=1 // pred_check
      _
    $region23: #{gnn_forward.1} parent=1 // pred_check_branch
      %521 = sbr.rel (0) target = $region25
    $region24: #{gnn_forward.1} parent=1 // pred_region
      %s523 = ssub.s32 128, 128
      %524 = vsyncadd [#allocation5], %s523
      %s526 = sshll.u32 [#allocation6], 4
      %s527 = int_to_ptr.vmem [resolvable:$true] %s526
      %529 = dma.vmem_to_hbm [thread:$0]  %s527, 128, %s4, [#allocation5]
    $region25: #{gnn_forward.1} parent=1 // pred_fallthru
      _
    // Predicated region
    $region26: #{gnn_forward.1} parent=1 // pred_check
      _
    $region27: #{gnn_forward.1} parent=1 // pred_check_branch
      %531 = sbr.rel (0) target = $region29
    $region28: #{gnn_forward.1} parent=1 // pred_region
      %532 = dma.done [#allocation5], 128
    $region29: #{gnn_forward.1} parent=1 // pred_fallthru
      _
    %533 = vsyncpa [#allocation4], 1
    %534 = vsyncpa [#allocation5], 1

</llo_original>
